<compile_context>
chip_gen: v6e
topology: v6e:2x2x1
jax: 0.10.0
libtpu: 0.0.40
codegen_flags: <defaults>
</compile_context>

<pallas_src>
import jax
import jax.numpy as jnp
from jax.experimental import pallas as pl
from jax.experimental.pallas import tpu as pltpu


def _policy_broadcast_kernel(row_ref, o_ref):
    # row_ref: (1, L) policy row, resident in VMEM across all grid steps.
    # o_ref:   (TR, L) output tile.
    # One vreg-broadcast + store per grid step; the kernel is store-slot / HBM-write bound.
    o_ref[...] = jnp.broadcast_to(row_ref[...], o_ref.shape)


def tabular_policy_forward(xs: jax.Array, approx: jax.Array, *, tile_rows: int | None = None) -> jax.Array:
    """Replicates TabularPolicyStorage.forward: tile the (1, N) policy to (xs.shape[0], N).

    `xs` contributes only its leading batch dimension (its values never enter the compute).
    `tile_rows` optionally overrides the row-tile size (used to exercise the multi-step grid).
    """
    batch = xs.shape[0]
    num_selections = approx.shape[1]
    dtype = approx.dtype
    itemsize = jnp.dtype(dtype).itemsize
    LANE = 128

    # ---- choose a lane-dense presentation of the output (layout plumbing only) ----
    if num_selections % LANE == 0:
        # Already lane-dense: present the natural (B, N) layout.
        row = approx
        num_rows, lane_w = batch, num_selections
    elif (LANE % num_selections == 0) and ((batch * num_selections) % LANE == 0):
        # Pack: build a 128-wide dense row once; present the output as (B*N/128, 128).
        row = jnp.tile(approx, (1, LANE // num_selections))  # (1, 128), built once in the wrapper
        num_rows, lane_w = (batch * num_selections) // LANE, LANE
    else:
        # Fallback: masked lane stores (correct, just not store-optimal).
        # TODO(synk): a lcm(N,128)-wide super-row presentation could make this path
        #             lane-dense too; not worth the complexity for a 0-flop broadcast.
        row = approx
        num_rows, lane_w = batch, num_selections

    # ---- row-tile size: big enough to amortize per-step overhead, small enough for VMEM ----
    TARGET_TILE_BYTES = 4 << 20  # ~4 MiB per output buffer (x2 for double buffering)
    if tile_rows is not None:
        tr = min(num_rows, int(tile_rows))
    else:
        tr = min(num_rows, max(512, TARGET_TILE_BYTES // max(1, lane_w * itemsize)))
    if tr < num_rows:
        tr = max(8, (tr // 8) * 8)  # keep sublane-aligned when not full-extent

    grid = (pl.cdiv(num_rows, tr),)

    out = pl.pallas_call(
        _policy_broadcast_kernel,
        out_shape=jax.ShapeDtypeStruct((num_rows, lane_w), dtype),
        grid=grid,
        in_specs=[pl.BlockSpec((1, lane_w), lambda i: (0, 0))],   # policy row stays resident
        out_specs=pl.BlockSpec((tr, lane_w), lambda i: (i, 0)),   # tiled over rows
        compiler_params=pltpu.CompilerParams(
            dimension_semantics=("parallel",),   # shard row tiles across TCs (v7x megacore)
            vmem_limit_bytes=32 * 1024 * 1024,   # explicit; >> 2x tile bytes, safe on all gens
        ),
        cost_estimate=pl.CostEstimate(
            flops=0,
            transcendentals=0,
            bytes_accessed=(batch * num_selections + num_selections) * itemsize,
        ),
    )(row)

    return out.reshape(batch, num_selections)


def make_tabular_policy_params(num_selections: int) -> jax.Array:
    """Deterministic init matching nn.Parameter(torch.ones(1, N) / N)."""
    return jnp.ones((1, num_selections), dtype=jnp.float32) / num_selections


if __name__ == "__main__":
    key = jax.random.PRNGKey(0)

    # --- Case 1: module-spec shapes (tiny; exercises the packed lane-dense path) ---
    batch, in_features, num_selections = 2, 16, 32
    xs = jax.random.normal(key, (batch, in_features), dtype=jnp.float32)
    approx = make_tabular_policy_params(num_selections)

    policies = jax.block_until_ready(tabular_policy_forward(xs, approx))
    ref = jnp.tile(approx, (batch, 1))
    assert policies.shape == (batch, num_selections)
    assert policies.dtype == jnp.float32
    assert jnp.allclose(policies, ref)

    # --- Case 2: lane-dense packed path with more rows (B*N divisible by 128) ---
    batch2 = 64
    xs2 = jax.random.normal(key, (batch2, in_features), dtype=jnp.float32)
    policies2 = jax.block_until_ready(tabular_policy_forward(xs2, approx))
    assert policies2.shape == (batch2, num_selections)
    assert jnp.allclose(policies2, jnp.tile(approx, (batch2, 1)))

    # --- Case 3: packed path with a multi-step grid and a partial last tile ---
    batch3 = 96  # R = 96*32/128 = 24 packed rows; tile_rows=16 -> grid=(2,), masked tail
    xs3 = jax.random.normal(key, (batch3, in_features), dtype=jnp.float32)
    policies3 = jax.block_until_ready(tabular_policy_forward(xs3, approx, tile_rows=16))
    assert policies3.shape == (batch3, num_selections)
    assert jnp.allclose(policies3, jnp.tile(approx, (batch3, 1)))

    # --- Case 4: N already a multiple of 128 (natural lane-dense layout) ---
    num_selections4 = 128
    approx4 = make_tabular_policy_params(num_selections4)
    xs4 = jax.random.normal(key, (16, in_features), dtype=jnp.float32)
    policies4 = jax.block_until_ready(tabular_policy_forward(xs4, approx4))
    assert policies4.shape == (16, num_selections4)
    assert jnp.allclose(policies4, jnp.tile(approx4, (16, 1)))

    # --- Case 5: fallback path (N neither a multiple nor a divisor of 128) ---
    num_selections5 = 96
    approx5 = make_tabular_policy_params(num_selections5)
    xs5 = jax.random.normal(key, (10, in_features), dtype=jnp.float32)
    policies5 = jax.block_until_ready(tabular_policy_forward(xs5, approx5))
    assert policies5.shape == (10, num_selections5)
    assert jnp.allclose(policies5, jnp.tile(approx5, (10, 1)))

    print("KERNEL_OK")
</pallas_src>

<mosaic_0001>
module attributes {stable_mosaic.version = 11 : i64} {
  func.func @_policy_broadcast_kernel(%arg0: i32, %arg1: memref<1x32xf32, #tpu.memory_space<vmem>>, %arg2: memref<2x32xf32, #tpu.memory_space<vmem>>) attributes {dimension_semantics = [#tpu.dimension_semantics<parallel>], iteration_bounds = array<i64: 1>, scalar_prefetch = 0 : i64, scratch_operands = 0 : i64, tpu.core_type = #tpu.core_type<tc>, window_params = [{pipeline_mode = #tpu.pipeline_mode<synchronous>, transform_indices = @transform_0, window_bounds = array<i64: 1, 32>}, {transform_indices = @transform_1, window_bounds = array<i64: 2, 32>}]} {
    %c0 = arith.constant 0 : index
    %c0_0 = arith.constant 0 : index
    %0 = vector.load %arg1[%c0, %c0_0] : memref<1x32xf32, #tpu.memory_space<vmem>>, vector<1x32xf32>
    %1 = vector.shape_cast %0 : vector<1x32xf32> to vector<1x32xf32>
    %2 = vector.broadcast %1 : vector<1x32xf32> to vector<2x32xf32>
    %c0_1 = arith.constant 0 : index
    %c0_2 = arith.constant 0 : index
    %3 = vector.load %arg2[%c0_1, %c0_2] : memref<2x32xf32, #tpu.memory_space<vmem>>, vector<2x32xf32>
    tpu.vector_store %arg2[%c0_1, %c0_2], %2 {strides = array<i32>} : memref<2x32xf32, #tpu.memory_space<vmem>>, vector<2x32xf32>,
    return
  }
  func.func @transform_0(%arg0: i32) -> (i32, i32) {
    %c0_i32 = arith.constant 0 : i32
    %c0_i32_0 = arith.constant 0 : i32
    %c0_i32_1 = arith.constant 0 : i32
    return %c0_i32, %c0_i32_0 : i32, i32
  }
  func.func @transform_1(%arg0: i32) -> (i32, i32) {
    %c0_i32 = arith.constant 0 : i32
    %c0_i32_0 = arith.constant 0 : i32
    return %arg0, %c0_i32 : i32, i32
  }
}

</mosaic_0001>

<llo_original>
// kernel: tpu_custom_call.1
$region0: #{tpu_custom_call.1}
  #allocation0 [shape = 'u32[]', space=smem, size = 0x4, offset = 0x4, fixed_abs, tag = 'smem constant byte address 0x4 - core index']
  #allocation1 [shape = 'u32[144,128]{1,0:T(1,128)}', space=vmem, size = 0x12000, scoped, tag = 'internal scratch']
  %s0 = inlined_call_operand.hbm [shape: f32[1,32], index: 0, kind: input, shape index: {}]
  %s1 = inlined_call_operand.hbm [shape: f32[2,32], index: 1, kind: output, shape index: {}]
  %s2 = sld [smem:[#allocation0]]
  $region18: #{tpu_custom_call.1} parent=0
    _
  %s4 = ssub.s32 1, %s2
  %s5 = scalar_select 0, %s4, %s2
  $region1: #{tpu_custom_call.1} parent=0
    #allocation2 [shape = 'u8[512]{0}', space=vmem, size = 0x400, scoped, tag = 'input window, operand 0, single buffered']
    #allocation3 [shape = 's32[1]{0}', space=sflag, size = 0x4, scoped, tag = 'scoped memory for tpu_custom_call.1']
    #allocation4 [shape = 's32[1]{0}', space=sflag, size = 0x4, scoped, tag = 'scoped memory for tpu_custom_call.1']
    #allocation5 [shape = 'u8[1024]{0}', space=vmem, size = 0x400, scoped, tag = 'output window, operand 0, single buffered']
    %6 = vsyncpa [#allocation3], 0
    %7 = vsyncpa [#allocation4], 0
    // Predicated region
    $region2: #{tpu_custom_call.1} parent=1 // pred_check
      _
    $region3: #{tpu_custom_call.1} parent=1 // pred_check_branch
      %9 = sbr.rel (0) target = $region5
    $region4: #{tpu_custom_call.1} parent=1 // pred_region
      %s11 = ssub.s32 16, 16
      %12 = vsyncadd [#allocation3], %s11
      %s14 = sshll.u32 [#allocation2], 4
      %s15 = int_to_ptr.vmem [resolvable:$true] %s14
      %17 = dma.hbm_to_vmem [thread:$0]  %s0, 16, %s15, [#allocation3]
    $region5: #{tpu_custom_call.1} parent=1 // pred_fallthru
      _
    // Predicated region
    $region6: #{tpu_custom_call.1} parent=1 // pred_check
      _
    $region7: #{tpu_custom_call.1} parent=1 // pred_check_branch
      %19 = sbr.rel (0) target = $region9
    $region8: #{tpu_custom_call.1} parent=1 // pred_region
      %20 = dma.done [#allocation3], 16
    $region9: #{tpu_custom_call.1} parent=1 // pred_fallthru
      _
    %v21 = vld [vmem:[#allocation2] sm:$0x1]
    %v23 = vlaneseq
    %v24 = vshrl.u32 %v23, 7
    %v25 = vsub.s32 0, %v24
    %v26 = vrot.slane %v21, %v25
    %vm28 = vcmask 254976
    %29 = vst.msk [vmem:[#allocation5] sm:$0x3] %vm28, %v26
    // Predicated region
    $region10: #{tpu_custom_call.1} parent=1 // pred_check
      _
    $region11: #{tpu_custom_call.1} parent=1 // pred_check_branch
      %31 = sbr.rel (0) target = $region13
    $region12: #{tpu_custom_call.1} parent=1 // pred_region
      %s33 = ssub.s32 32, 32
      %34 = vsyncadd [#allocation4], %s33
      %s36 = sshll.u32 [#allocation5], 4
      %s37 = int_to_ptr.vmem [resolvable:$true] %s36
      %39 = dma.vmem_to_hbm [thread:$0]  %s37, 32, %s1, [#allocation4]
    $region13: #{tpu_custom_call.1} parent=1 // pred_fallthru
      _
    // Predicated region
    $region14: #{tpu_custom_call.1} parent=1 // pred_check
      _
    $region15: #{tpu_custom_call.1} parent=1 // pred_check_branch
      %41 = sbr.rel (0) target = $region17
    $region16: #{tpu_custom_call.1} parent=1 // pred_region
      %42 = dma.done [#allocation4], 32
    $region17: #{tpu_custom_call.1} parent=1 // pred_fallthru
      _
    %43 = vsyncpa [#allocation3], 1
    %44 = vsyncpa [#allocation4], 1

</llo_original>
